<compile_context>
chip_gen: v7x
topology: tpu7x:2x2x1
jax: 0.10.0
libtpu: 0.0.40
codegen_flags: <defaults>
</compile_context>

<pallas_src>
import jax
import jax.numpy as jnp
from jax.experimental import pallas as pl
from jax.experimental.pallas import tpu as pltpu

HIDDEN = 256


# ----------------------------------------------------------------------------
# Kernel: one batch tile, both Q-heads fused.
# ----------------------------------------------------------------------------
def _critic_kernel(
    state_ref, action_ref,
    w14s_ref, w14a_ref, b14_ref,     # fused layer 1 (heads 1 & 2 side-by-side)
    w2_ref, b2_ref,                  # layer 2, head 1
    w5_ref, b5_ref,                  # layer 2, head 2
    w36_ref, b36_ref,                # fused layer 3 (block-diagonal, N = 2)
    q_ref,
):
    wdt = w14s_ref.dtype             # MXU input dtype (bf16 by default)
    hid = w2_ref.shape[0]

    # ---- layer 1, both heads at once; concat folded into a row-split weight ----
    h = (
        jnp.dot(state_ref[...].astype(wdt), w14s_ref[...],
                preferred_element_type=jnp.float32)
        + jnp.dot(action_ref[...].astype(wdt), w14a_ref[...],
                  preferred_element_type=jnp.float32)
        + b14_ref[...]
    )
    h = jnp.maximum(h, 0.0).astype(wdt)                       # (tb, 2*hid)

    # ---- layer 2 (different LHS per head, so two MXU passes are required) ----
    g1 = jnp.maximum(
        jnp.dot(h[:, :hid], w2_ref[...], preferred_element_type=jnp.float32)
        + b2_ref[...], 0.0)
    g2 = jnp.maximum(
        jnp.dot(h[:, hid:], w5_ref[...], preferred_element_type=jnp.float32)
        + b5_ref[...], 0.0)

    # ---- layer 3: both heads in one N=2 matmul -> lane-dense (tb, 2) output ----
    g = jnp.concatenate([g1.astype(wdt), g2.astype(wdt)], axis=1)   # (tb, 2*hid)
    q = jnp.dot(g, w36_ref[...], preferred_element_type=jnp.float32) + b36_ref[...]
    q_ref[...] = q.astype(q_ref.dtype)


# ----------------------------------------------------------------------------
# Wrapper: batch-tiled grid, VMEM-resident weights, single (B, 2) output.
# ----------------------------------------------------------------------------
def critic_forward(state, action, packed, *, tile_b=512):
    """Pallas equivalent of Critic.forward(state, action) -> (q1, q2).

    `packed` comes from pack_critic_params() (fused + bf16-cast weights).
    """
    batch, state_dim = state.shape
    action_dim = action.shape[1]
    hid = packed["w2"].shape[0]

    if batch <= tile_b:
        tb = batch
        pad_batch = batch
    else:
        assert tile_b % 8 == 0, "batch tile must be a multiple of 8"
        tb = tile_b
        pad_batch = pl.cdiv(batch, tb) * tb
        if pad_batch != batch:
            pad = pad_batch - batch
            state = jnp.pad(state, ((0, pad), (0, 0)))
            action = jnp.pad(action, ((0, pad), (0, 0)))
    grid = (pad_batch // tb,)

    def act_spec(dim):
        return pl.BlockSpec((tb, dim), lambda i: (i, 0))

    def resident(p):
        # whole-array block, same block index every grid step -> stays in VMEM
        return pl.BlockSpec(p.shape, lambda i: (0, 0))

    weight_order = ("w14_s", "w14_a", "b14", "w2", "b2", "w5", "b5", "w36", "b36")
    weights = [packed[k] for k in weight_order]

    flops = 2 * pad_batch * ((state_dim + action_dim) * 2 * hid
                             + 2 * hid * hid + 2 * hid * 2)
    bytes_accessed = (
        sum(int(w.size) * w.dtype.itemsize for w in weights)
        + int(state.size) * state.dtype.itemsize
        + int(action.size) * action.dtype.itemsize
        + pad_batch * 2 * 4
    )

    q = pl.pallas_call(
        _critic_kernel,
        out_shape=jax.ShapeDtypeStruct((pad_batch, 2), jnp.float32),
        grid_spec=pltpu.PrefetchScalarGridSpec(
            num_scalar_prefetch=0,
            grid=grid,
            in_specs=[act_spec(state_dim), act_spec(action_dim)]
                     + [resident(w) for w in weights],
            out_specs=pl.BlockSpec((tb, 2), lambda i: (i, 0)),
        ),
        compiler_params=pltpu.CompilerParams(dimension_semantics=("parallel",)),
        cost_estimate=pl.CostEstimate(flops=int(flops), transcendentals=0,
                                      bytes_accessed=int(bytes_accessed)),
    )(state, action, *weights)

    q = q[:batch]
    return q[:, 0:1], q[:, 1:2]


# ----------------------------------------------------------------------------
# Parameter init (mirrors nn.Linear uniform init; weights stored (in, out)).
# ----------------------------------------------------------------------------
def init_critic_params(key, state_dim, action_dim, hidden=HIDDEN):
    in_dim = state_dim + action_dim

    def linear(key, fan_in, fan_out):
        kw, kb = jax.random.split(key)
        bound = 1.0 / jnp.sqrt(jnp.float32(fan_in))
        w = jax.random.uniform(kw, (fan_in, fan_out), jnp.float32, -bound, bound)
        b = jax.random.uniform(kb, (1, fan_out), jnp.float32, -bound, bound)
        return w, b

    keys = jax.random.split(key, 6)
    p = {}
    p["w1"], p["b1"] = linear(keys[0], in_dim, hidden)
    p["w2"], p["b2"] = linear(keys[1], hidden, hidden)
    p["w3"], p["b3"] = linear(keys[2], hidden, 1)
    p["w4"], p["b4"] = linear(keys[3], in_dim, hidden)
    p["w5"], p["b5"] = linear(keys[4], hidden, hidden)
    p["w6"], p["b6"] = linear(keys[5], hidden, 1)
    return p


def pack_critic_params(params, state_dim, weight_dtype=jnp.bfloat16):
    """One-time pack: fuse the heads (layers 1 & 3), split layer-1 rows by
    state/action, cast weights to bf16 (biases stay f32)."""
    hid = params["w2"].shape[0]
    w14 = jnp.concatenate([params["w1"], params["w4"]], axis=1)        # (in_dim, 2*hid)
    b14 = jnp.concatenate([params["b1"], params["b4"]], axis=1)        # (1, 2*hid)
    w36 = jnp.zeros((2 * hid, 2), jnp.float32)
    w36 = w36.at[:hid, 0:1].set(params["w3"]).at[hid:, 1:2].set(params["w6"])
    b36 = jnp.concatenate([params["b3"], params["b6"]], axis=1)        # (1, 2)
    return {
        "w14_s": w14[:state_dim].astype(weight_dtype),
        "w14_a": w14[state_dim:].astype(weight_dtype),
        "b14": b14.astype(jnp.float32),
        "w2": params["w2"].astype(weight_dtype),
        "b2": params["b2"].astype(jnp.float32),
        "w5": params["w5"].astype(weight_dtype),
        "b5": params["b5"].astype(jnp.float32),
        "w36": w36.astype(weight_dtype),
        "b36": b36.astype(jnp.float32),
    }


def critic_reference(state, action, packed):
    """Pure-JAX reference using the same quantization as the kernel
    (bf16 MXU inputs, f32 accumulation / bias / ReLU)."""
    wdt = packed["w14_s"].dtype
    hid = packed["w2"].shape[0]
    h = (jnp.dot(state.astype(wdt), packed["w14_s"],
                 preferred_element_type=jnp.float32)
         + jnp.dot(action.astype(wdt), packed["w14_a"],
                   preferred_element_type=jnp.float32)
         + packed["b14"])
    h = jnp.maximum(h, 0.0).astype(wdt)
    g1 = jnp.maximum(jnp.dot(h[:, :hid], packed["w2"],
                             preferred_element_type=jnp.float32) + packed["b2"], 0.0)
    g2 = jnp.maximum(jnp.dot(h[:, hid:], packed["w5"],
                             preferred_element_type=jnp.float32) + packed["b5"], 0.0)
    g = jnp.concatenate([g1.astype(wdt), g2.astype(wdt)], axis=1)
    q = jnp.dot(g, packed["w36"], preferred_element_type=jnp.float32) + packed["b36"]
    return q[:, 0:1], q[:, 1:2]


if __name__ == "__main__":
    key = jax.random.PRNGKey(0)
    k_params, k_state, k_action = jax.random.split(key, 3)

    batch, state_dim, action_dim = 8, 17, 6
    params = init_critic_params(k_params, state_dim, action_dim)
    packed = pack_critic_params(params, state_dim)        # bf16-packed, done once

    state = jax.random.normal(k_state, (batch, state_dim), jnp.float32)
    action = jax.random.normal(k_action, (batch, action_dim), jnp.float32)

    q1, q2 = critic_forward(state, action, packed)
    q1 = jax.block_until_ready(q1)
    q2 = jax.block_until_ready(q2)

    q1_ref, q2_ref = critic_reference(state, action, packed)
    assert q1.shape == (batch, 1) and q2.shape == (batch, 1)
    assert jnp.allclose(q1, q1_ref, atol=2e-3, rtol=2e-3)
    assert jnp.allclose(q2, q2_ref, atol=2e-3, rtol=2e-3)

    print("KERNEL_OK")
</pallas_src>

<mosaic_0001>
module attributes {stable_mosaic.version = 11 : i64} {
  func.func @_critic_kernel(%arg0: i32, %arg1: memref<8x17xf32, #tpu.memory_space<vmem>>, %arg2: memref<8x6xf32, #tpu.memory_space<vmem>>, %arg3: memref<17x512xbf16, #tpu.memory_space<vmem>>, %arg4: memref<6x512xbf16, #tpu.memory_space<vmem>>, %arg5: memref<1x512xf32, #tpu.memory_space<vmem>>, %arg6: memref<256x256xbf16, #tpu.memory_space<vmem>>, %arg7: memref<1x256xf32, #tpu.memory_space<vmem>>, %arg8: memref<256x256xbf16, #tpu.memory_space<vmem>>, %arg9: memref<1x256xf32, #tpu.memory_space<vmem>>, %arg10: memref<512x2xbf16, #tpu.memory_space<vmem>>, %arg11: memref<1x2xf32, #tpu.memory_space<vmem>>, %arg12: memref<8x2xf32, #tpu.memory_space<vmem>>) attributes {dimension_semantics = [#tpu.dimension_semantics<parallel>], iteration_bounds = array<i64: 1>, scalar_prefetch = 0 : i64, scratch_operands = 0 : i64, tpu.core_type = #tpu.core_type<tc>, window_params = [{transform_indices = @transform_0, window_bounds = array<i64: 8, 17>}, {transform_indices = @transform_1, window_bounds = array<i64: 8, 6>}, {pipeline_mode = #tpu.pipeline_mode<synchronous>, transform_indices = @transform_2, window_bounds = array<i64: 17, 512>}, {pipeline_mode = #tpu.pipeline_mode<synchronous>, transform_indices = @transform_3, window_bounds = array<i64: 6, 512>}, {pipeline_mode = #tpu.pipeline_mode<synchronous>, transform_indices = @transform_4, window_bounds = array<i64: 1, 512>}, {pipeline_mode = #tpu.pipeline_mode<synchronous>, transform_indices = @transform_5, window_bounds = array<i64: 256, 256>}, {pipeline_mode = #tpu.pipeline_mode<synchronous>, transform_indices = @transform_6, window_bounds = array<i64: 1, 256>}, {pipeline_mode = #tpu.pipeline_mode<synchronous>, transform_indices = @transform_7, window_bounds = array<i64: 256, 256>}, {pipeline_mode = #tpu.pipeline_mode<synchronous>, transform_indices = @transform_8, window_bounds = array<i64: 1, 256>}, {pipeline_mode = #tpu.pipeline_mode<synchronous>, transform_indices = @transform_9, window_bounds = array<i64: 512, 2>}, {pipeline_mode = #tpu.pipeline_mode<synchronous>, transform_indices = @transform_10, window_bounds = array<i64: 1, 2>}, {transform_indices = @transform_11, window_bounds = array<i64: 8, 2>}]} {
    %c0 = arith.constant 0 : index
    %c0_0 = arith.constant 0 : index
    %0 = vector.load %arg1[%c0, %c0_0] : memref<8x17xf32, #tpu.memory_space<vmem>>, vector<8x17xf32>
    %1 = arith.truncf %0 : vector<8x17xf32> to vector<8x17xbf16>
    %c0_1 = arith.constant 0 : index
    %c0_2 = arith.constant 0 : index
    %2 = vector.load %arg3[%c0_1, %c0_2] : memref<17x512xbf16, #tpu.memory_space<vmem>>, vector<17x512xbf16>
    %cst = arith.constant dense<0.000000e+00> : vector<8x512xf32>
    %3 = tpu.matmul %1, %2, %cst {dimension_numbers = #tpu.dot_dimension_numbers<[1], [0], [0], [1], [0, 0, 1, 1], [], []>} : vector<8x17xbf16>, vector<17x512xbf16>, vector<8x512xf32> -> vector<8x512xf32>
    %c0_3 = arith.constant 0 : index
    %c0_4 = arith.constant 0 : index
    %4 = vector.load %arg2[%c0_3, %c0_4] : memref<8x6xf32, #tpu.memory_space<vmem>>, vector<8x6xf32>
    %5 = arith.truncf %4 : vector<8x6xf32> to vector<8x6xbf16>
    %c0_5 = arith.constant 0 : index
    %c0_6 = arith.constant 0 : index
    %6 = vector.load %arg4[%c0_5, %c0_6] : memref<6x512xbf16, #tpu.memory_space<vmem>>, vector<6x512xbf16>
    %cst_7 = arith.constant dense<0.000000e+00> : vector<8x512xf32>
    %7 = tpu.matmul %5, %6, %cst_7 {dimension_numbers = #tpu.dot_dimension_numbers<[1], [0], [0], [1], [0, 0, 1, 1], [], []>} : vector<8x6xbf16>, vector<6x512xbf16>, vector<8x512xf32> -> vector<8x512xf32>
    %8 = arith.addf %3, %7 : vector<8x512xf32>
    %c0_8 = arith.constant 0 : index
    %c0_9 = arith.constant 0 : index
    %9 = vector.load %arg5[%c0_8, %c0_9] : memref<1x512xf32, #tpu.memory_space<vmem>>, vector<1x512xf32>
    %10 = vector.broadcast %9 : vector<1x512xf32> to vector<8x512xf32>
    %11 = arith.addf %8, %10 : vector<8x512xf32>
    %cst_10 = arith.constant 0.000000e+00 : f32
    %12 = vector.broadcast %cst_10 : f32 to vector<8x512xf32>
    %13 = arith.maximumf %11, %12 : vector<8x512xf32>
    %14 = arith.truncf %13 : vector<8x512xf32> to vector<8x512xbf16>
    %15 = vector.extract_strided_slice %14 {offsets = [0, 0], sizes = [8, 256], strides = [1, 1]} : vector<8x512xbf16> to vector<8x256xbf16>
    %c0_11 = arith.constant 0 : index
    %c0_12 = arith.constant 0 : index
    %16 = vector.load %arg6[%c0_11, %c0_12] : memref<256x256xbf16, #tpu.memory_space<vmem>>, vector<256x256xbf16>
    %cst_13 = arith.constant dense<0.000000e+00> : vector<8x256xf32>
    %17 = tpu.matmul %15, %16, %cst_13 {dimension_numbers = #tpu.dot_dimension_numbers<[1], [0], [0], [1], [0, 0, 1, 1], [], []>} : vector<8x256xbf16>, vector<256x256xbf16>, vector<8x256xf32> -> vector<8x256xf32>
    %c0_14 = arith.constant 0 : index
    %c0_15 = arith.constant 0 : index
    %18 = vector.load %arg7[%c0_14, %c0_15] : memref<1x256xf32, #tpu.memory_space<vmem>>, vector<1x256xf32>
    %19 = vector.broadcast %18 : vector<1x256xf32> to vector<8x256xf32>
    %20 = arith.addf %17, %19 : vector<8x256xf32>
    %cst_16 = arith.constant 0.000000e+00 : f32
    %21 = vector.broadcast %cst_16 : f32 to vector<8x256xf32>
    %22 = arith.maximumf %20, %21 : vector<8x256xf32>
    %23 = vector.extract_strided_slice %14 {offsets = [0, 256], sizes = [8, 256], strides = [1, 1]} : vector<8x512xbf16> to vector<8x256xbf16>
    %c0_17 = arith.constant 0 : index
    %c0_18 = arith.constant 0 : index
    %24 = vector.load %arg8[%c0_17, %c0_18] : memref<256x256xbf16, #tpu.memory_space<vmem>>, vector<256x256xbf16>
    %cst_19 = arith.constant dense<0.000000e+00> : vector<8x256xf32>
    %25 = tpu.matmul %23, %24, %cst_19 {dimension_numbers = #tpu.dot_dimension_numbers<[1], [0], [0], [1], [0, 0, 1, 1], [], []>} : vector<8x256xbf16>, vector<256x256xbf16>, vector<8x256xf32> -> vector<8x256xf32>
    %c0_20 = arith.constant 0 : index
    %c0_21 = arith.constant 0 : index
    %26 = vector.load %arg9[%c0_20, %c0_21] : memref<1x256xf32, #tpu.memory_space<vmem>>, vector<1x256xf32>
    %27 = vector.broadcast %26 : vector<1x256xf32> to vector<8x256xf32>
    %28 = arith.addf %25, %27 : vector<8x256xf32>
    %cst_22 = arith.constant 0.000000e+00 : f32
    %29 = vector.broadcast %cst_22 : f32 to vector<8x256xf32>
    %30 = arith.maximumf %28, %29 : vector<8x256xf32>
    %31 = arith.truncf %22 : vector<8x256xf32> to vector<8x256xbf16>
    %32 = arith.truncf %30 : vector<8x256xf32> to vector<8x256xbf16>
    %33 = tpu.concatenate %31, %32 in 1 : vector<8x256xbf16>, vector<8x256xbf16> -> vector<8x512xbf16>
    %c0_23 = arith.constant 0 : index
    %c0_24 = arith.constant 0 : index
    %34 = vector.load %arg10[%c0_23, %c0_24] : memref<512x2xbf16, #tpu.memory_space<vmem>>, vector<512x2xbf16>
    %cst_25 = arith.constant dense<0.000000e+00> : vector<8x2xf32>
    %35 = tpu.matmul %33, %34, %cst_25 {dimension_numbers = #tpu.dot_dimension_numbers<[1], [0], [0], [1], [0, 0, 1, 1], [], []>} : vector<8x512xbf16>, vector<512x2xbf16>, vector<8x2xf32> -> vector<8x2xf32>
    %c0_26 = arith.constant 0 : index
    %c0_27 = arith.constant 0 : index
    %36 = vector.load %arg11[%c0_26, %c0_27] : memref<1x2xf32, #tpu.memory_space<vmem>>, vector<1x2xf32>
    %37 = vector.broadcast %36 : vector<1x2xf32> to vector<8x2xf32>
    %38 = arith.addf %35, %37 : vector<8x2xf32>
    %c0_28 = arith.constant 0 : index
    %c0_29 = arith.constant 0 : index
    %39 = vector.load %arg12[%c0_28, %c0_29] : memref<8x2xf32, #tpu.memory_space<vmem>>, vector<8x2xf32>
    tpu.vector_store %arg12[%c0_28, %c0_29], %38 {strides = array<i32>} : memref<8x2xf32, #tpu.memory_space<vmem>>, vector<8x2xf32>,
    return
  }
  func.func @transform_0(%arg0: i32) -> (i32, i32) {
    %c0_i32 = arith.constant 0 : i32
    %c0_i32_0 = arith.constant 0 : i32
    return %arg0, %c0_i32 : i32, i32
  }
  func.func @transform_1(%arg0: i32) -> (i32, i32) {
    %c0_i32 = arith.constant 0 : i32
    %c0_i32_0 = arith.constant 0 : i32
    return %arg0, %c0_i32 : i32, i32
  }
  func.func @transform_2(%arg0: i32) -> (i32, i32) {
    %c0_i32 = arith.constant 0 : i32
    %c0_i32_0 = arith.constant 0 : i32
    %c0_i32_1 = arith.constant 0 : i32
    return %c0_i32, %c0_i32_0 : i32, i32
  }
  func.func @transform_3(%arg0: i32) -> (i32, i32) {
    %c0_i32 = arith.constant 0 : i32
    %c0_i32_0 = arith.constant 0 : i32
    %c0_i32_1 = arith.constant 0 : i32
    return %c0_i32, %c0_i32_0 : i32, i32
  }
  func.func @transform_4(%arg0: i32) -> (i32, i32) {
    %c0_i32 = arith.constant 0 : i32
    %c0_i32_0 = arith.constant 0 : i32
    %c0_i32_1 = arith.constant 0 : i32
    return %c0_i32, %c0_i32_0 : i32, i32
  }
  func.func @transform_5(%arg0: i32) -> (i32, i32) {
    %c0_i32 = arith.constant 0 : i32
    %c0_i32_0 = arith.constant 0 : i32
    %c0_i32_1 = arith.constant 0 : i32
    return %c0_i32, %c0_i32_0 : i32, i32
  }
  func.func @transform_6(%arg0: i32) -> (i32, i32) {
    %c0_i32 = arith.constant 0 : i32
    %c0_i32_0 = arith.constant 0 : i32
    %c0_i32_1 = arith.constant 0 : i32
    return %c0_i32, %c0_i32_0 : i32, i32
  }
  func.func @transform_7(%arg0: i32) -> (i32, i32) {
    %c0_i32 = arith.constant 0 : i32
    %c0_i32_0 = arith.constant 0 : i32
    %c0_i32_1 = arith.constant 0 : i32
    return %c0_i32, %c0_i32_0 : i32, i32
  }
  func.func @transform_8(%arg0: i32) -> (i32, i32) {
    %c0_i32 = arith.constant 0 : i32
    %c0_i32_0 = arith.constant 0 : i32
    %c0_i32_1 = arith.constant 0 : i32
    return %c0_i32, %c0_i32_0 : i32, i32
  }
  func.func @transform_9(%arg0: i32) -> (i32, i32) {
    %c0_i32 = arith.constant 0 : i32
    %c0_i32_0 = arith.constant 0 : i32
    %c0_i32_1 = arith.constant 0 : i32
    return %c0_i32, %c0_i32_0 : i32, i32
  }
  func.func @transform_10(%arg0: i32) -> (i32, i32) {
    %c0_i32 = arith.constant 0 : i32
    %c0_i32_0 = arith.constant 0 : i32
    %c0_i32_1 = arith.constant 0 : i32
    return %c0_i32, %c0_i32_0 : i32, i32
  }
  func.func @transform_11(%arg0: i32) -> (i32, i32) {
    %c0_i32 = arith.constant 0 : i32
    %c0_i32_0 = arith.constant 0 : i32
    return %arg0, %c0_i32 : i32, i32
  }
}

</mosaic_0001>

<llo_original>
// kernel: tpu_custom_call.1
$region0: #{tpu_custom_call.1}
  #allocation0 [shape = 'u32[]', space=smem, size = 0x4, offset = 0x4, fixed_abs, tag = 'smem constant byte address 0x4 - core index']
  #allocation1 [shape = 'u32[144,128]{1,0:T(1,128)}', space=vmem, size = 0x12000, scoped, tag = 'internal scratch']
  %s0 = inlined_call_operand.hbm [shape: f32[8,17], index: 0, kind: input, shape index: {}]
  %s1 = inlined_call_operand.hbm [shape: f32[8,6], index: 1, kind: input, shape index: {}]
  %s2 = inlined_call_operand.hbm [shape: bf16[17,512], index: 2, kind: input, shape index: {}]
  %s3 = inlined_call_operand.vmem [shape: bf16[6,512], index: 3, kind: input, shape index: {}]
  %s4 = inlined_call_operand.vmem [shape: f32[1,512], index: 4, kind: input, shape index: {}]
  %s5 = inlined_call_operand.vmem [shape: bf16[256,256], index: 5, kind: input, shape index: {}]
  %s6 = inlined_call_operand.vmem [shape: f32[1,256], index: 6, kind: input, shape index: {}]
  %s7 = inlined_call_operand.hbm [shape: bf16[256,256], index: 7, kind: input, shape index: {}]
  %s8 = inlined_call_operand.vmem [shape: f32[1,256], index: 8, kind: input, shape index: {}]
  %s9 = inlined_call_operand.vmem [shape: bf16[512,2], index: 9, kind: input, shape index: {}]
  %s10 = inlined_call_operand.vmem [shape: f32[1,2], index: 10, kind: input, shape index: {}]
  %s11 = inlined_call_operand.vmem [shape: f32[8,2], index: 11, kind: output, shape index: {}]
  %s12 = sld [smem:[#allocation0]]
  $region70: #{tpu_custom_call.1} parent=0
    _
  %s14 = ssub.s32 1, %s12
  %s15 = scalar_select 0, %s14, %s12
  $region1: #{tpu_custom_call.1} parent=0
    #allocation2 [shape = 'u8[4096]{0}', space=vmem, size = 0x1000, scoped, tag = 'input window, operand 0, single buffered']
    #allocation3 [shape = 's32[1]{0}', space=sflag, size = 0x4, scoped, tag = 'scoped memory for tpu_custom_call.1']
    #allocation4 [shape = 'u8[4096]{0}', space=vmem, size = 0x1000, scoped, tag = 'input window, operand 1, single buffered']
    #allocation5 [shape = 's32[1]{0}', space=sflag, size = 0x4, scoped, tag = 'scoped memory for tpu_custom_call.1']
    #allocation6 [shape = 'u8[24576]{0}', space=vmem, size = 0x6000, scoped, tag = 'input window, operand 2, single buffered']
    #allocation7 [shape = 'u8[131072]{0}', space=vmem, size = 0x20000, scoped, tag = 'input window, operand 7, single buffered']
    #allocation8 [shape = 's32[1]{0}', space=sflag, size = 0x4, scoped, tag = 'scoped memory for tpu_custom_call.1']
    %16 = vsyncpa [#allocation3], 0
    %17 = vsyncpa [#allocation5], 0
    %18 = vsyncpa [#allocation8], 0
    // Predicated region
    $region2: #{tpu_custom_call.1} parent=1 // pred_check
      _
    $region3: #{tpu_custom_call.1} parent=1 // pred_check_branch
      %20 = sbr.rel (0) target = $region5
    $region4: #{tpu_custom_call.1} parent=1 // pred_region
      %s22 = ssub.s32 128, 128
      %23 = vsyncadd [#allocation3], %s22
      %s25 = sshll.u32 [#allocation2], 4
      %s26 = int_to_ptr.vmem [resolvable:$true] %s25
      %28 = dma.hbm_to_vmem [thread:$0]  %s0, 128, %s26, [#allocation3]
    $region5: #{tpu_custom_call.1} parent=1 // pred_fallthru
      _
    // Predicated region
    $region6: #{tpu_custom_call.1} parent=1 // pred_check
      _
    $region7: #{tpu_custom_call.1} parent=1 // pred_check_branch
      %30 = sbr.rel (0) target = $region9
    $region8: #{tpu_custom_call.1} parent=1 // pred_region
      %s32 = ssub.s32 128, 128
      %33 = vsyncadd [#allocation5], %s32
      %s35 = sshll.u32 [#allocation4], 4
      %s36 = int_to_ptr.vmem [resolvable:$true] %s35
      %38 = dma.hbm_to_vmem [thread:$0]  %s1, 128, %s36, [#allocation5]
    $region9: #{tpu_custom_call.1} parent=1 // pred_fallthru
      _
    // Predicated region
    $region10: #{tpu_custom_call.1} parent=1 // pred_check
      _
    $region11: #{tpu_custom_call.1} parent=1 // pred_check_branch
      %40 = sbr.rel (0) target = $region13
    $region12: #{tpu_custom_call.1} parent=1 // pred_region
      %s42 = ssub.s32 768, 768
      %43 = vsyncadd [#allocation5], %s42
      %s44 = sshll.u32 [#allocation6], 4
      %s45 = int_to_ptr.vmem [resolvable:$true] %s44
      %50 = dma.hbm_to_vmem [thread:$0]  %s2, 768, %s45, [#allocation5], 256, 256, 16
    $region13: #{tpu_custom_call.1} parent=1 // pred_fallthru
      _
    // Predicated region
    $region14: #{tpu_custom_call.1} parent=1 // pred_check
      _
    $region15: #{tpu_custom_call.1} parent=1 // pred_check_branch
      %52 = sbr.rel (0) target = $region17
    $region16: #{tpu_custom_call.1} parent=1 // pred_region
      _
    $region17: #{tpu_custom_call.1} parent=1 // pred_fallthru
      _
    // Predicated region
    $region18: #{tpu_custom_call.1} parent=1 // pred_check
      _
    $region19: #{tpu_custom_call.1} parent=1 // pred_check_branch
      %54 = sbr.rel (0) target = $region21
    $region20: #{tpu_custom_call.1} parent=1 // pred_region
      _
    $region21: #{tpu_custom_call.1} parent=1 // pred_fallthru
      _
    // Predicated region
    $region22: #{tpu_custom_call.1} parent=1 // pred_check
      _
    $region23: #{tpu_custom_call.1} parent=1 // pred_check_branch
      %56 = sbr.rel (0) target = $region25
    $region24: #{tpu_custom_call.1} parent=1 // pred_region
      _
    $region25: #{tpu_custom_call.1} parent=1 // pred_fallthru
      _
    // Predicated region
    $region26: #{tpu_custom_call.1} parent=1 // pred_check
      _
    $region27: #{tpu_custom_call.1} parent=1 // pred_check_branch
      %58 = sbr.rel (0) target = $region29
    $region28: #{tpu_custom_call.1} parent=1 // pred_region
      _
    $region29: #{tpu_custom_call.1} parent=1 // pred_fallthru
      _
    // Predicated region
    $region30: #{tpu_custom_call.1} parent=1 // pred_check
      _
    $region31: #{tpu_custom_call.1} parent=1 // pred_check_branch
      %60 = sbr.rel (0) target = $region33
    $region32: #{tpu_custom_call.1} parent=1 // pred_region
      %s62 = ssub.s32 4096, 4096
      %63 = vsyncadd [#allocation8], %s62
      %s64 = sshll.u32 [#allocation7], 4
      %s65 = int_to_ptr.vmem [resolvable:$true] %s64
      %70 = dma.hbm_to_vmem [thread:$0]  %s7, 4096, %s65, [#allocation8], 128, 128, 8
    $region33: #{tpu_custom_call.1} parent=1 // pred_fallthru
      _
    // Predicated region
    $region34: #{tpu_custom_call.1} parent=1 // pred_check
      _
    $region35: #{tpu_custom_call.1} parent=1 // pred_check_branch
      %72 = sbr.rel (0) target = $region37
    $region36: #{tpu_custom_call.1} parent=1 // pred_region
      _
    $region37: #{tpu_custom_call.1} parent=1 // pred_fallthru
      _
    // Predicated region
    $region38: #{tpu_custom_call.1} parent=1 // pred_check
      _
    $region39: #{tpu_custom_call.1} parent=1 // pred_check_branch
      %74 = sbr.rel (0) target = $region41
    $region40: #{tpu_custom_call.1} parent=1 // pred_region
      _
    $region41: #{tpu_custom_call.1} parent=1 // pred_fallthru
      _
    // Predicated region
    $region42: #{tpu_custom_call.1} parent=1 // pred_check
      _
    $region43: #{tpu_custom_call.1} parent=1 // pred_check_branch
      %76 = sbr.rel (0) target = $region45
    $region44: #{tpu_custom_call.1} parent=1 // pred_region
      _
    $region45: #{tpu_custom_call.1} parent=1 // pred_fallthru
      _
    // Predicated region
    $region46: #{tpu_custom_call.1} parent=1 // pred_check
      _
    $region47: #{tpu_custom_call.1} parent=1 // pred_check_branch
      %78 = sbr.rel (0) target = $region49
    $region48: #{tpu_custom_call.1} parent=1 // pred_region
      %79 = dma.done [#allocation3], 128
    $region49: #{tpu_custom_call.1} parent=1 // pred_fallthru
      _
    // Predicated region
    $region50: #{tpu_custom_call.1} parent=1 // pred_check
      _
    $region51: #{tpu_custom_call.1} parent=1 // pred_check_branch
      %81 = sbr.rel (0) target = $region53
    $region52: #{tpu_custom_call.1} parent=1 // pred_region
      %82 = dma.done [#allocation5], 128
    $region53: #{tpu_custom_call.1} parent=1 // pred_fallthru
      _
    // Predicated region
    $region54: #{tpu_custom_call.1} parent=1 // pred_check
      _
    $region55: #{tpu_custom_call.1} parent=1 // pred_check_branch
      %84 = sbr.rel (0) target = $region57
    $region56: #{tpu_custom_call.1} parent=1 // pred_region
      %85 = dma.done [#allocation5], 768
    $region57: #{tpu_custom_call.1} parent=1 // pred_fallthru
      _
    // Predicated region
    $region58: #{tpu_custom_call.1} parent=1 // pred_check
      _
    $region59: #{tpu_custom_call.1} parent=1 // pred_check_branch
      %87 = sbr.rel (0) target = $region61
    $region60: #{tpu_custom_call.1} parent=1 // pred_region
      %88 = dma.done [#allocation8], 4096
    $region61: #{tpu_custom_call.1} parent=1 // pred_fallthru
      _
    %v90 = vld [vmem:[#allocation2] sm:$0xff]
    %v91 = vpack.c.bf16 %v90, %v90
    %v92 = vld [vmem:[#allocation6] sm:$0xff]
    %v93 = vld [vmem:[#allocation6 + $0x8] sm:$0xff]
    %v94 = vld [vmem:[#allocation6 + $0x10] sm:$0xff]
    %v95 = vld [vmem:[#allocation6 + $0x18] sm:$0xff]
    %v96 = vld [vmem:[#allocation6 + $0x20] sm:$0x11]
    %v97 = vld [vmem:[#allocation6 + $0x28] sm:$0x11]
    %v98 = vld [vmem:[#allocation4] sm:$0xff]
    %v99 = vpack.c.bf16 %v98, %v98
    %v100 = vld [vmem:[%s3] sm:$0x77]
    %v101 = vld [vmem:[%s3 + $0x8] sm:$0x77]
    %v104 = vunpack.c.l.b16 %v100
    %v105 = vunpack.c.h.b16 %v100
    %v106 = vunpack.c.l.b16 %v101
    %v107 = vunpack.c.h.b16 %v101
    %v108 = vpack.c.b16 %v104, %v104
    %v109 = vpack.c.b16 %v105, %v105
    %v110 = vpack.c.b16 %v106, %v106
    %v111 = vpack.c.b16 %v107, %v107
    %vm112 = vcmask 48128
    %v114 = vsel %vm112, %v99, 0
    %vm116 = vcmask 1042432
    %v118 = vsel %vm116, %v108, 0
    %v121 = vsel %vm116, %v109, 0
    %v124 = vsel %vm116, %v110, 0
    %v127 = vsel %vm116, %v111, 0
    %129 = vmatprep.subr.bf16.mxu0 %v121
    %130 = vmatpush1.bf16.msra.mxu0 %v118
    %131 = vmatprep.subr.bf16.mxu0 0
    %132 = vmatpush1.bf16.msra.mxu0 0
    %133 = vmatprep.subr.bf16.mxu0 0
    %134 = vmatpush1.bf16.msra.mxu0 0
    %135 = vmatprep.subr.bf16.mxu0 0
    %136 = vmatpush1.bf16.msra.mxu0 0
    %137 = vmatprep.subr.bf16.mxu0 0
    %138 = vmatpush1.bf16.msra.mxu0 0
    %139 = vmatprep.subr.bf16.mxu0 0
    %140 = vmatpush1.bf16.msra.mxu0 0
    %141 = vmatprep.subr.bf16.mxu0 0
    %142 = vmatpush1.bf16.msra.mxu0 0
    %143 = vmatprep.subr.bf16.mxu0 0
    %144 = vmatpush1.bf16.msra.mxu0 0
    %145 = vmatprep.subr.bf16.mxu0 0
    %146 = vmatpush1.bf16.msra.mxu0 0
    %147 = vmatprep.subr.bf16.mxu0 0
    %148 = vmatpush1.bf16.msra.mxu0 0
    %149 = vmatprep.subr.bf16.mxu0 0
    %150 = vmatpush1.bf16.msra.mxu0 0
    %151 = vmatprep.subr.bf16.mxu0 0
    %152 = vmatpush1.bf16.msra.mxu0 0
    %153 = vmatprep.subr.bf16.mxu0 0
    %154 = vmatpush1.bf16.msra.mxu0 0
    %155 = vmatprep.subr.bf16.mxu0 0
    %156 = vmatpush1.bf16.msra.mxu0 0
    %157 = vmatprep.subr.bf16.mxu0 0
    %158 = vmatpush1.bf16.msra.mxu0 0
    %159 = vmatprep.subr.bf16.mxu0 0
    %160 = vmatpush1.bf16.msra.mxu0 0
    %161 = vmatprep.mubr.bf16.mxu0 0
    %162 = vmatmul.mubr.bf16.gmra.mrb[0].mxu0 %v114
    %v163 = vpop.f32.mrb[0].mxu0
    %v164 = vadd.f32 0.0, %v163
    %v165 = vpop.f32.mrb[0].mxu0
    %v166 = vadd.f32 0.0, %v165
    %v167 = vpop.f32.mrb[0].mxu0
    %v168 = vpop.f32.mrb[0].mxu0
    %169 = vdwg.mxu0
    %170 = vmatprep.subr.bf16.mxu0 %v127
    %171 = vmatpush1.bf16.msra.mxu0 %v124
    %172 = vmatprep.subr.bf16.mxu0 0
    %173 = vmatpush1.bf16.msra.mxu0 0
    %174 = vmatprep.subr.bf16.mxu0 0
    %175 = vmatpush1.bf16.msra.mxu0 0
    %176 = vmatprep.subr.bf16.mxu0 0
    %177 = vmatpush1.bf16.msra.mxu0 0
    %178 = vmatprep.subr.bf16.mxu0 0
    %179 = vmatpush1.bf16.msra.mxu0 0
    %180 = vmatprep.subr.bf16.mxu0 0
    %181 = vmatpush1.bf16.msra.mxu0 0
    %182 = vmatprep.subr.bf16.mxu0 0
    %183 = vmatpush1.bf16.msra.mxu0 0
    %184 = vmatprep.subr.bf16.mxu0 0
    %185 = vmatpush1.bf16.msra.mxu0 0
    %186 = vmatprep.subr.bf16.mxu0 0
    %187 = vmatpush1.bf16.msra.mxu0 0
    %188 = vmatprep.subr.bf16.mxu0 0
    %189 = vmatpush1.bf16.msra.mxu0 0
    %190 = vmatprep.subr.bf16.mxu0 0
    %191 = vmatpush1.bf16.msra.mxu0 0
    %192 = vmatprep.subr.bf16.mxu0 0
    %193 = vmatpush1.bf16.msra.mxu0 0
    %194 = vmatprep.subr.bf16.mxu0 0
    %195 = vmatpush1.bf16.msra.mxu0 0
    %196 = vmatprep.subr.bf16.mxu0 0
    %197 = vmatpush1.bf16.msra.mxu0 0
    %198 = vmatprep.subr.bf16.mxu0 0
    %199 = vmatpush1.bf16.msra.mxu0 0
    %200 = vmatprep.subr.bf16.mxu0 0
    %201 = vmatpush1.bf16.msra.mxu0 0
    %202 = vmatprep.mubr.bf16.mxu0 0
    %203 = vmatmul.mubr.bf16.gmra.mrb[0].mxu0 %v114
    %v204 = vpop.f32.mrb[0].mxu0
    %v205 = vadd.f32 0.0, %v204
    %v206 = vpop.f32.mrb[0].mxu0
    %v207 = vadd.f32 0.0, %v206
    %v208 = vpop.f32.mrb[0].mxu0
    %v209 = vpop.f32.mrb[0].mxu0
    %210 = vdwg.mxu0
    %v217 = vunpack.c.l.b16 %v92
    %v218 = vunpack.c.h.b16 %v92
    %v219 = vunpack.c.l.b16 %v93
    %v220 = vunpack.c.h.b16 %v93
    %v221 = vunpack.c.l.b16 %v94
    %v222 = vunpack.c.h.b16 %v94
    %v223 = vunpack.c.l.b16 %v95
    %v224 = vunpack.c.h.b16 %v95
    %v225 = vunpack.c.l.b16 %v96
    %v226 = vunpack.c.h.b16 %v96
    %v227 = vunpack.c.l.b16 %v97
    %v228 = vunpack.c.h.b16 %v97
    %v229 = vpack.c.b16 %v221, %v217
    %v230 = vpack.c.b16 %v222, %v218
    %v231 = vpack.c.b16 %v223, %v219
    %v232 = vpack.c.b16 %v224, %v220
    %v233 = vpack.c.b16 %v225, %v225
    %v234 = vpack.c.b16 %v226, %v226
    %v235 = vpack.c.b16 %v227, %v227
    %v236 = vpack.c.b16 %v228, %v228
    %vm241 = vcmask 138240
    %v243 = vsel %vm241, %v91, 0
    %vm245 = vcmask 1040384
    %v246 = vsel 0, 4294967295, 65535
    %v247 = vsel %vm245, %v246, 0
    %v249 = vand.u32 %v233, %v247
    %v252 = vand.u32 %v234, %v247
    %v255 = vand.u32 %v235, %v247
    %v258 = vand.u32 %v236, %v247
    %260 = vmatprep.subr.bf16.mxu0 %v230
    %261 = vmatpush1.bf16.msra.mxu0 %v229
    %262 = vmatprep.subr.bf16.mxu0 %v252
    %263 = vmatpush1.bf16.msra.mxu0 %v249
    %264 = vmatprep.subr.bf16.mxu0 0
    %265 = vmatpush1.bf16.msra.mxu0 0
    %266 = vmatprep.subr.bf16.mxu0 0
    %267 = vmatpush1.bf16.msra.mxu0 0
    %268 = vmatprep.subr.bf16.mxu0 0
    %269 = vmatpush1.bf16.msra.mxu0 0
    %270 = vmatprep.subr.bf16.mxu0 0
    %271 = vmatpush1.bf16.msra.mxu0 0
    %272 = vmatprep.subr.bf16.mxu0 0
    %273 = vmatpush1.bf16.msra.mxu0 0
    %274 = vmatprep.subr.bf16.mxu0 0
    %275 = vmatpush1.bf16.msra.mxu0 0
    %276 = vmatprep.subr.bf16.mxu0 0
    %277 = vmatpush1.bf16.msra.mxu0 0
    %278 = vmatprep.subr.bf16.mxu0 0
    %279 = vmatpush1.bf16.msra.mxu0 0
    %280 = vmatprep.subr.bf16.mxu0 0
    %281 = vmatpush1.bf16.msra.mxu0 0
    %282 = vmatprep.subr.bf16.mxu0 0
    %283 = vmatpush1.bf16.msra.mxu0 0
    %284 = vmatprep.subr.bf16.mxu0 0
    %285 = vmatpush1.bf16.msra.mxu0 0
    %286 = vmatprep.subr.bf16.mxu0 0
    %287 = vmatpush1.bf16.msra.mxu0 0
    %288 = vmatprep.subr.bf16.mxu0 0
    %289 = vmatpush1.bf16.msra.mxu0 0
    %290 = vmatprep.subr.bf16.mxu0 0
    %291 = vmatpush1.bf16.msra.mxu0 0
    %292 = vmatprep.mubr.bf16.mxu0 0
    %293 = vmatmul.mubr.bf16.gmra.mrb[0].mxu0 %v243
    %v294 = vpop.f32.mrb[0].mxu0
    %v295 = vadd.f32 %v164, %v294
    %v296 = vpop.f32.mrb[0].mxu0
    %v297 = vadd.f32 %v166, %v296
    %v298 = vpop.f32.mrb[0].mxu0
    %v299 = vpop.f32.mrb[0].mxu0
    %300 = vdwg.mxu0
    %301 = vmatprep.subr.bf16.mxu0 %v232
    %302 = vmatpush1.bf16.msra.mxu0 %v231
    %303 = vmatprep.subr.bf16.mxu0 %v258
    %304 = vmatpush1.bf16.msra.mxu0 %v255
    %305 = vmatprep.subr.bf16.mxu0 0
    %306 = vmatpush1.bf16.msra.mxu0 0
    %307 = vmatprep.subr.bf16.mxu0 0
    %308 = vmatpush1.bf16.msra.mxu0 0
    %309 = vmatprep.subr.bf16.mxu0 0
    %310 = vmatpush1.bf16.msra.mxu0 0
    %311 = vmatprep.subr.bf16.mxu0 0
    %312 = vmatpush1.bf16.msra.mxu0 0
    %313 = vmatprep.subr.bf16.mxu0 0
    %314 = vmatpush1.bf16.msra.mxu0 0
    %315 = vmatprep.subr.bf16.mxu0 0
    %316 = vmatpush1.bf16.msra.mxu0 0
    %317 = vmatprep.subr.bf16.mxu0 0
    %318 = vmatpush1.bf16.msra.mxu0 0
    %319 = vmatprep.subr.bf16.mxu0 0
    %320 = vmatpush1.bf16.msra.mxu0 0
    %321 = vmatprep.subr.bf16.mxu0 0
    %322 = vmatpush1.bf16.msra.mxu0 0
    %323 = vmatprep.subr.bf16.mxu0 0
    %324 = vmatpush1.bf16.msra.mxu0 0
    %325 = vmatprep.subr.bf16.mxu0 0
    %326 = vmatpush1.bf16.msra.mxu0 0
    %327 = vmatprep.subr.bf16.mxu0 0
    %328 = vmatpush1.bf16.msra.mxu0 0
    %329 = vmatprep.subr.bf16.mxu0 0
    %330 = vmatpush1.bf16.msra.mxu0 0
    %331 = vmatprep.subr.bf16.mxu0 0
    %332 = vmatpush1.bf16.msra.mxu0 0
    %333 = vmatprep.mubr.bf16.mxu0 0
    %334 = vmatmul.mubr.bf16.gmra.mrb[0].mxu0 %v243
    %v335 = vpop.f32.mrb[0].mxu0
    %v336 = vadd.f32 %v205, %v335
    %v337 = vpop.f32.mrb[0].mxu0
    %v338 = vadd.f32 %v207, %v337
    %v339 = vpop.f32.mrb[0].mxu0
    %v340 = vpop.f32.mrb[0].mxu0
    %341 = vdwg.mxu0
    %v342 = vld [vmem:[%s4] sm:$0xf]
    %v344 = vlaneseq
    %v345 = vshrl.u32 %v344, 7
    %v346 = vsub.s32 0, %v345
    %v347 = vrot.slane %v342, %v346
    %v348 = vlaneseq
    %v349 = vshrl.u32 %v348, 7
    %v350 = vsub.s32 1, %v349
    %v351 = vrot.slane %v342, %v350
    %v352 = vlaneseq
    %v353 = vshrl.u32 %v352, 7
    %v354 = vsub.s32 2, %v353
    %v355 = vrot.slane %v342, %v354
    %v356 = vlaneseq
    %v357 = vshrl.u32 %v356, 7
    %v358 = vsub.s32 3, %v357
    %v359 = vrot.slane %v342, %v358
    %v364 = vadd.f32 %v295, %v347
    %v365 = vadd.f32 %v297, %v351
    %v366 = vadd.f32 %v336, %v355
    %v367 = vadd.f32 %v338, %v359
    %v368 = vmax.f32 %v364, 0.0
    %v369 = vmax.f32 %v365, 0.0
    %v370 = vmax.f32 %v366, 0.0
    %v371 = vmax.f32 %v367, 0.0
    %v372 = vpack.c.bf16 %v368, %v368
    %v373 = vpack.c.bf16 %v369, %v369
    %v374 = vpack.c.bf16 %v370, %v370
    %v375 = vpack.c.bf16 %v371, %v371
    %v376 = vld [vmem:[%s5] sm:$0xff]
    %v377 = vld [vmem:[%s5 + $0x8] sm:$0xff]
    %v378 = vld [vmem:[%s5 + $0x10] sm:$0xff]
    %v379 = vld [vmem:[%s5 + $0x18] sm:$0xff]
    %v380 = vld [vmem:[%s5 + $0x20] sm:$0xff]
    %v381 = vld [vmem:[%s5 + $0x28] sm:$0xff]
    %v382 = vld [vmem:[%s5 + $0x30] sm:$0xff]
    %v383 = vld [vmem:[%s5 + $0x38] sm:$0xff]
    %v384 = vld [vmem:[%s5 + $0x40] sm:$0xff]
    %v385 = vld [vmem:[%s5 + $0x48] sm:$0xff]
    %v386 = vld [vmem:[%s5 + $0x50] sm:$0xff]
    %v387 = vld [vmem:[%s5 + $0x58] sm:$0xff]
    %v388 = vld [vmem:[%s5 + $0x60] sm:$0xff]
    %v389 = vld [vmem:[%s5 + $0x68] sm:$0xff]
    %v390 = vld [vmem:[%s5 + $0x70] sm:$0xff]
    %v391 = vld [vmem:[%s5 + $0x78] sm:$0xff]
    %v392 = vld [vmem:[%s5 + $0x80] sm:$0xff]
    %v393 = vld [vmem:[%s5 + $0x88] sm:$0xff]
    %v394 = vld [vmem:[%s5 + $0x90] sm:$0xff]
    %v395 = vld [vmem:[%s5 + $0x98] sm:$0xff]
    %v396 = vld [vmem:[%s5 + $0xa0] sm:$0xff]
    %v397 = vld [vmem:[%s5 + $0xa8] sm:$0xff]
    %v398 = vld [vmem:[%s5 + $0xb0] sm:$0xff]
    %v399 = vld [vmem:[%s5 + $0xb8] sm:$0xff]
    %v400 = vld [vmem:[%s5 + $0xc0] sm:$0xff]
    %v401 = vld [vmem:[%s5 + $0xc8] sm:$0xff]
    %v402 = vld [vmem:[%s5 + $0xd0] sm:$0xff]
    %v403 = vld [vmem:[%s5 + $0xd8] sm:$0xff]
    %v404 = vld [vmem:[%s5 + $0xe0] sm:$0xff]
    %v405 = vld [vmem:[%s5 + $0xe8] sm:$0xff]
    %v406 = vld [vmem:[%s5 + $0xf0] sm:$0xff]
    %v407 = vld [vmem:[%s5 + $0xf8] sm:$0xff]
    %v408 = vld [vmem:[%s6] sm:$0x3]
    %v410 = vlaneseq
    %v411 = vshrl.u32 %v410, 7
    %v412 = vsub.s32 0, %v411
    %v413 = vrot.slane %v408, %v412
    %v414 = vlaneseq
    %v415 = vshrl.u32 %v414, 7
    %v416 = vsub.s32 1, %v415
    %v417 = vrot.slane %v408, %v416
    %v452 = vunpack.c.l.b16 %v376
    %v453 = vunpack.c.h.b16 %v376
    %v454 = vunpack.c.l.b16 %v377
    %v455 = vunpack.c.h.b16 %v377
    %v456 = vunpack.c.l.b16 %v378
    %v457 = vunpack.c.h.b16 %v378
    %v458 = vunpack.c.l.b16 %v379
    %v459 = vunpack.c.h.b16 %v379
    %v460 = vunpack.c.l.b16 %v380
    %v461 = vunpack.c.h.b16 %v380
    %v462 = vunpack.c.l.b16 %v381
    %v463 = vunpack.c.h.b16 %v381
    %v464 = vunpack.c.l.b16 %v382
    %v465 = vunpack.c.h.b16 %v382
    %v466 = vunpack.c.l.b16 %v383
    %v467 = vunpack.c.h.b16 %v383
    %v468 = vunpack.c.l.b16 %v384
    %v469 = vunpack.c.h.b16 %v384
    %v470 = vunpack.c.l.b16 %v385
    %v471 = vunpack.c.h.b16 %v385
    %v472 = vunpack.c.l.b16 %v386
    %v473 = vunpack.c.h.b16 %v386
    %v474 = vunpack.c.l.b16 %v387
    %v475 = vunpack.c.h.b16 %v387
    %v476 = vunpack.c.l.b16 %v388
    %v477 = vunpack.c.h.b16 %v388
    %v478 = vunpack.c.l.b16 %v389
    %v479 = vunpack.c.h.b16 %v389
    %v480 = vunpack.c.l.b16 %v390
    %v481 = vunpack.c.h.b16 %v390
    %v482 = vunpack.c.l.b16 %v391
    %v483 = vunpack.c.h.b16 %v391
    %v484 = vunpack.c.l.b16 %v392
    %v485 = vunpack.c.h.b16 %v392
    %v486 = vunpack.c.l.b16 %v393
    %v487 = vunpack.c.h.b16 %v393
    %v488 = vunpack.c.l.b16 %v394
    %v489 = vunpack.c.h.b16 %v394
    %v490 = vunpack.c.l.b16 %v395
    %v491 = vunpack.c.h.b16 %v395
    %v492 = vunpack.c.l.b16 %v396
    %v493 = vunpack.c.h.b16 %v396
    %v494 = vunpack.c.l.b16 %v397
    %v495 = vunpack.c.h.b16 %v397
    %v496 = vunpack.c.l.b16 %v398
    %v497 = vunpack.c.h.b16 %v398
    %v498 = vunpack.c.l.b16 %v399
    %v499 = vunpack.c.h.b16 %v399
    %v500 = vunpack.c.l.b16 %v400
    %v501 = vunpack.c.h.b16 %v400
    %v502 = vunpack.c.l.b16 %v401
    %v503 = vunpack.c.h.b16 %v401
    %v504 = vunpack.c.l.b16 %v402
    %v505 = vunpack.c.h.b16 %v402
    %v506 = vunpack.c.l.b16 %v403
    %v507 = vunpack.c.h.b16 %v403
    %v508 = vunpack.c.l.b16 %v404
    %v509 = vunpack.c.h.b16 %v404
    %v510 = vunpack.c.l.b16 %v405
    %v511 = vunpack.c.h.b16 %v405
    %v512 = vunpack.c.l.b16 %v406
    %v513 = vunpack.c.h.b16 %v406
    %v514 = vunpack.c.l.b16 %v407
    %v515 = vunpack.c.h.b16 %v407
    %v516 = vpack.c.b16 %v454, %v452
    %v517 = vpack.c.b16 %v455, %v453
    %v518 = vpack.c.b16 %v458, %v456
    %v519 = vpack.c.b16 %v459, %v457
    %v520 = vpack.c.b16 %v462, %v460
    %v521 = vpack.c.b16 %v463, %v461
    %v522 = vpack.c.b16 %v466, %v464
    %v523 = vpack.c.b16 %v467, %v465
    %v524 = vpack.c.b16 %v470, %v468
    %v525 = vpack.c.b16 %v471, %v469
    %v526 = vpack.c.b16 %v474, %v472
    %v527 = vpack.c.b16 %v475, %v473
    %v528 = vpack.c.b16 %v478, %v476
    %v529 = vpack.c.b16 %v479, %v477
    %v530 = vpack.c.b16 %v482, %v480
    %v531 = vpack.c.b16 %v483, %v481
    %v532 = vpack.c.b16 %v486, %v484
    %v533 = vpack.c.b16 %v487, %v485
    %v534 = vpack.c.b16 %v490, %v488
    %v535 = vpack.c.b16 %v491, %v489
    %v536 = vpack.c.b16 %v494, %v492
    %v537 = vpack.c.b16 %v495, %v493
    %v538 = vpack.c.b16 %v498, %v496
    %v539 = vpack.c.b16 %v499, %v497
    %v540 = vpack.c.b16 %v502, %v500
    %v541 = vpack.c.b16 %v503, %v501
    %v542 = vpack.c.b16 %v506, %v504
    %v543 = vpack.c.b16 %v507, %v505
    %v544 = vpack.c.b16 %v510, %v508
    %v545 = vpack.c.b16 %v511, %v509
    %v546 = vpack.c.b16 %v514, %v512
    %v547 = vpack.c.b16 %v515, %v513
    %580 = vmatprep.subr.bf16.mxu0 %v517
    %581 = vmatpush1.bf16.msra.mxu0 %v516
    %582 = vmatprep.subr.bf16.mxu0 %v519
    %583 = vmatpush1.bf16.msra.mxu0 %v518
    %584 = vmatprep.subr.bf16.mxu0 %v521
    %585 = vmatpush1.bf16.msra.mxu0 %v520
    %586 = vmatprep.subr.bf16.mxu0 %v523
    %587 = vmatpush1.bf16.msra.mxu0 %v522
    %588 = vmatprep.subr.bf16.mxu0 %v525
    %589 = vmatpush1.bf16.msra.mxu0 %v524
    %590 = vmatprep.subr.bf16.mxu0 %v527
    %591 = vmatpush1.bf16.msra.mxu0 %v526
    %592 = vmatprep.subr.bf16.mxu0 %v529
    %593 = vmatpush1.bf16.msra.mxu0 %v528
    %594 = vmatprep.subr.bf16.mxu0 %v531
    %595 = vmatpush1.bf16.msra.mxu0 %v530
    %596 = vmatprep.subr.bf16.mxu0 %v533
    %597 = vmatpush1.bf16.msra.mxu0 %v532
    %598 = vmatprep.subr.bf16.mxu0 %v535
    %599 = vmatpush1.bf16.msra.mxu0 %v534
    %600 = vmatprep.subr.bf16.mxu0 %v537
    %601 = vmatpush1.bf16.msra.mxu0 %v536
    %602 = vmatprep.subr.bf16.mxu0 %v539
    %603 = vmatpush1.bf16.msra.mxu0 %v538
    %604 = vmatprep.subr.bf16.mxu0 %v541
    %605 = vmatpush1.bf16.msra.mxu0 %v540
    %606 = vmatprep.subr.bf16.mxu0 %v543
    %607 = vmatpush1.bf16.msra.mxu0 %v542
    %608 = vmatprep.subr.bf16.mxu0 %v545
    %609 = vmatpush1.bf16.msra.mxu0 %v544
    %610 = vmatprep.subr.bf16.mxu0 %v547
    %611 = vmatpush1.bf16.msra.mxu0 %v546
    %612 = vmatprep.mubr.bf16.mxu0 %v373
    %613 = vmatmul.mubr.bf16.gmra.mrb[0].mxu0 %v372
    %v614 = vpop.f32.mrb[0].mxu0
    %v615 = vadd.f32 %v413, %v614
    %v616 = vpop.f32.mrb[0].mxu0
    %v617 = vadd.f32 %v417, %v616
    %v618 = vpop.f32.mrb[0].mxu0
    %v619 = vpop.f32.mrb[0].mxu0
    %620 = vdwg.mxu0
    %v621 = vmax.f32 %v615, 0.0
    %v622 = vmax.f32 %v617, 0.0
    %v623 = vld [vmem:[#allocation7] sm:$0xff]
    %v624 = vld [vmem:[#allocation7 + $0x8] sm:$0xff]
    %v625 = vld [vmem:[#allocation7 + $0x10] sm:$0xff]
    %v626 = vld [vmem:[#allocation7 + $0x18] sm:$0xff]
    %v627 = vld [vmem:[#allocation7 + $0x20] sm:$0xff]
    %v628 = vld [vmem:[#allocation7 + $0x28] sm:$0xff]
    %v629 = vld [vmem:[#allocation7 + $0x30] sm:$0xff]
    %v630 = vld [vmem:[#allocation7 + $0x38] sm:$0xff]
    %v631 = vld [vmem:[#allocation7 + $0x40] sm:$0xff]
    %v632 = vld [vmem:[#allocation7 + $0x48] sm:$0xff]
    %v633 = vld [vmem:[#allocation7 + $0x50] sm:$0xff]
    %v634 = vld [vmem:[#allocation7 + $0x58] sm:$0xff]
    %v635 = vld [vmem:[#allocation7 + $0x60] sm:$0xff]
    %v636 = vld [vmem:[#allocation7 + $0x68] sm:$0xff]
    %v637 = vld [vmem:[#allocation7 + $0x70] sm:$0xff]
    %v638 = vld [vmem:[#allocation7 + $0x78] sm:$0xff]
    %v639 = vld [vmem:[#allocation7 + $0x80] sm:$0xff]
    %v640 = vld [vmem:[#allocation7 + $0x88] sm:$0xff]
    %v641 = vld [vmem:[#allocation7 + $0x90] sm:$0xff]
    %v642 = vld [vmem:[#allocation7 + $0x98] sm:$0xff]
    %v643 = vld [vmem:[#allocation7 + $0xa0] sm:$0xff]
    %v644 = vld [vmem:[#allocation7 + $0xa8] sm:$0xff]
    %v645 = vld [vmem:[#allocation7 + $0xb0] sm:$0xff]
    %v646 = vld [vmem:[#allocation7 + $0xb8] sm:$0xff]
    %v647 = vld [vmem:[#allocation7 + $0xc0] sm:$0xff]
    %v648 = vld [vmem:[#allocation7 + $0xc8] sm:$0xff]
    %v649 = vld [vmem:[#allocation7 + $0xd0] sm:$0xff]
    %v650 = vld [vmem:[#allocation7 + $0xd8] sm:$0xff]
    %v651 = vld [vmem:[#allocation7 + $0xe0] sm:$0xff]
    %v652 = vld [vmem:[#allocation7 + $0xe8] sm:$0xff]
    %v653 = vld [vmem:[#allocation7 + $0xf0] sm:$0xff]
    %v654 = vld [vmem:[#allocation7 + $0xf8] sm:$0xff]
    %v655 = vld [vmem:[%s8] sm:$0x3]
    %v657 = vlaneseq
    %v658 = vshrl.u32 %v657, 7
    %v659 = vsub.s32 0, %v658
    %v660 = vrot.slane %v655, %v659
    %v661 = vlaneseq
    %v662 = vshrl.u32 %v661, 7
    %v663 = vsub.s32 1, %v662
    %v664 = vrot.slane %v655, %v663
    %v699 = vunpack.c.l.b16 %v623
    %v700 = vunpack.c.h.b16 %v623
    %v701 = vunpack.c.l.b16 %v624
    %v702 = vunpack.c.h.b16 %v624
    %v703 = vunpack.c.l.b16 %v625
    %v704 = vunpack.c.h.b16 %v625
    %v705 = vunpack.c.l.b16 %v626
    %v706 = vunpack.c.h.b16 %v626
    %v707 = vunpack.c.l.b16 %v627
    %v708 = vunpack.c.h.b16 %v627
    %v709 = vunpack.c.l.b16 %v628
    %v710 = vunpack.c.h.b16 %v628
    %v711 = vunpack.c.l.b16 %v629
    %v712 = vunpack.c.h.b16 %v629
    %v713 = vunpack.c.l.b16 %v630
    %v714 = vunpack.c.h.b16 %v630
    %v715 = vunpack.c.l.b16 %v631
    %v716 = vunpack.c.h.b16 %v631
    %v717 = vunpack.c.l.b16 %v632
    %v718 = vunpack.c.h.b16 %v632
    %v719 = vunpack.c.l.b16 %v633
    %v720 = vunpack.c.h.b16 %v633
    %v721 = vunpack.c.l.b16 %v634
    %v722 = vunpack.c.h.b16 %v634
    %v723 = vunpack.c.l.b16 %v635
    %v724 = vunpack.c.h.b16 %v635
    %v725 = vunpack.c.l.b16 %v636
    %v726 = vunpack.c.h.b16 %v636
    %v727 = vunpack.c.l.b16 %v637
    %v728 = vunpack.c.h.b16 %v637
    %v729 = vunpack.c.l.b16 %v638
    %v730 = vunpack.c.h.b16 %v638
    %v731 = vunpack.c.l.b16 %v639
    %v732 = vunpack.c.h.b16 %v639
    %v733 = vunpack.c.l.b16 %v640
    %v734 = vunpack.c.h.b16 %v640
    %v735 = vunpack.c.l.b16 %v641
    %v736 = vunpack.c.h.b16 %v641
    %v737 = vunpack.c.l.b16 %v642
    %v738 = vunpack.c.h.b16 %v642
    %v739 = vunpack.c.l.b16 %v643
    %v740 = vunpack.c.h.b16 %v643
    %v741 = vunpack.c.l.b16 %v644
    %v742 = vunpack.c.h.b16 %v644
    %v743 = vunpack.c.l.b16 %v645
    %v744 = vunpack.c.h.b16 %v645
    %v745 = vunpack.c.l.b16 %v646
    %v746 = vunpack.c.h.b16 %v646
    %v747 = vunpack.c.l.b16 %v647
    %v748 = vunpack.c.h.b16 %v647
    %v749 = vunpack.c.l.b16 %v648
    %v750 = vunpack.c.h.b16 %v648
    %v751 = vunpack.c.l.b16 %v649
    %v752 = vunpack.c.h.b16 %v649
    %v753 = vunpack.c.l.b16 %v650
    %v754 = vunpack.c.h.b16 %v650
    %v755 = vunpack.c.l.b16 %v651
    %v756 = vunpack.c.h.b16 %v651
    %v757 = vunpack.c.l.b16 %v652
    %v758 = vunpack.c.h.b16 %v652
    %v759 = vunpack.c.l.b16 %v653
    %v760 = vunpack.c.h.b16 %v653
    %v761 = vunpack.c.l.b16 %v654
    %v762 = vunpack.c.h.b16 %v654
    %v763 = vpack.c.b16 %v701, %v699
    %v764 = vpack.c.b16 %v702, %v700
    %v765 = vpack.c.b16 %v705, %v703
    %v766 = vpack.c.b16 %v706, %v704
    %v767 = vpack.c.b16 %v709, %v707
    %v768 = vpack.c.b16 %v710, %v708
    %v769 = vpack.c.b16 %v713, %v711
    %v770 = vpack.c.b16 %v714, %v712
    %v771 = vpack.c.b16 %v717, %v715
    %v772 = vpack.c.b16 %v718, %v716
    %v773 = vpack.c.b16 %v721, %v719
    %v774 = vpack.c.b16 %v722, %v720
    %v775 = vpack.c.b16 %v725, %v723
    %v776 = vpack.c.b16 %v726, %v724
    %v777 = vpack.c.b16 %v729, %v727
    %v778 = vpack.c.b16 %v730, %v728
    %v779 = vpack.c.b16 %v733, %v731
    %v780 = vpack.c.b16 %v734, %v732
    %v781 = vpack.c.b16 %v737, %v735
    %v782 = vpack.c.b16 %v738, %v736
    %v783 = vpack.c.b16 %v741, %v739
    %v784 = vpack.c.b16 %v742, %v740
    %v785 = vpack.c.b16 %v745, %v743
    %v786 = vpack.c.b16 %v746, %v744
    %v787 = vpack.c.b16 %v749, %v747
    %v788 = vpack.c.b16 %v750, %v748
    %v789 = vpack.c.b16 %v753, %v751
    %v790 = vpack.c.b16 %v754, %v752
    %v791 = vpack.c.b16 %v757, %v755
    %v792 = vpack.c.b16 %v758, %v756
    %v793 = vpack.c.b16 %v761, %v759
    %v794 = vpack.c.b16 %v762, %v760
    %827 = vmatprep.subr.bf16.mxu0 %v764
    %828 = vmatpush1.bf16.msra.mxu0 %v763
    %829 = vmatprep.subr.bf16.mxu0 %v766
    %830 = vmatpush1.bf16.msra.mxu0 %v765
    %831 = vmatprep.subr.bf16.mxu0 %v768
    %832 = vmatpush1.bf16.msra.mxu0 %v767
    %833 = vmatprep.subr.bf16.mxu0 %v770
    %834 = vmatpush1.bf16.msra.mxu0 %v769
    %835 = vmatprep.subr.bf16.mxu0 %v772
    %836 = vmatpush1.bf16.msra.mxu0 %v771
    %837 = vmatprep.subr.bf16.mxu0 %v774
    %838 = vmatpush1.bf16.msra.mxu0 %v773
    %839 = vmatprep.subr.bf16.mxu0 %v776
    %840 = vmatpush1.bf16.msra.mxu0 %v775
    %841 = vmatprep.subr.bf16.mxu0 %v778
    %842 = vmatpush1.bf16.msra.mxu0 %v777
    %843 = vmatprep.subr.bf16.mxu0 %v780
    %844 = vmatpush1.bf16.msra.mxu0 %v779
    %845 = vmatprep.subr.bf16.mxu0 %v782
    %846 = vmatpush1.bf16.msra.mxu0 %v781
    %847 = vmatprep.subr.bf16.mxu0 %v784
    %848 = vmatpush1.bf16.msra.mxu0 %v783
    %849 = vmatprep.subr.bf16.mxu0 %v786
    %850 = vmatpush1.bf16.msra.mxu0 %v785
    %851 = vmatprep.subr.bf16.mxu0 %v788
    %852 = vmatpush1.bf16.msra.mxu0 %v787
    %853 = vmatprep.subr.bf16.mxu0 %v790
    %854 = vmatpush1.bf16.msra.mxu0 %v789
    %855 = vmatprep.subr.bf16.mxu0 %v792
    %856 = vmatpush1.bf16.msra.mxu0 %v791
    %857 = vmatprep.subr.bf16.mxu0 %v794
    %858 = vmatpush1.bf16.msra.mxu0 %v793
    %859 = vmatprep.mubr.bf16.mxu0 %v375
    %860 = vmatmul.mubr.bf16.gmra.mrb[0].mxu0 %v374
    %v861 = vpop.f32.mrb[0].mxu0
    %v862 = vadd.f32 %v660, %v861
    %v863 = vpop.f32.mrb[0].mxu0
    %v864 = vadd.f32 %v664, %v863
    %v865 = vpop.f32.mrb[0].mxu0
    %v866 = vpop.f32.mrb[0].mxu0
    %867 = vdwg.mxu0
    %v868 = vmax.f32 %v862, 0.0
    %v869 = vmax.f32 %v864, 0.0
    %v870 = vpack.c.bf16 %v621, %v621
    %v871 = vpack.c.bf16 %v622, %v622
    %v872 = vpack.c.bf16 %v868, %v868
    %v873 = vpack.c.bf16 %v869, %v869
    %v874 = vld [vmem:[%s9] sm:$0xf]
    %v875 = vld [vmem:[%s9 + $0x4] sm:$0xf]
    %v876 = vld [vmem:[%s9 + $0x8] sm:$0xf]
    %v877 = vld [vmem:[%s9 + $0xc] sm:$0xf]
    %v878 = vld [vmem:[%s9 + $0x10] sm:$0xf]
    %v879 = vld [vmem:[%s9 + $0x14] sm:$0xf]
    %v880 = vld [vmem:[%s9 + $0x18] sm:$0xf]
    %v881 = vld [vmem:[%s9 + $0x1c] sm:$0xf]
    %v882 = vld [vmem:[%s9 + $0x20] sm:$0xf]
    %v883 = vld [vmem:[%s9 + $0x24] sm:$0xf]
    %v884 = vld [vmem:[%s9 + $0x28] sm:$0xf]
    %v885 = vld [vmem:[%s9 + $0x2c] sm:$0xf]
    %v886 = vld [vmem:[%s9 + $0x30] sm:$0xf]
    %v887 = vld [vmem:[%s9 + $0x34] sm:$0xf]
    %v888 = vld [vmem:[%s9 + $0x38] sm:$0xf]
    %v889 = vld [vmem:[%s9 + $0x3c] sm:$0xf]
    %v890 = vld [vmem:[%s9 + $0x40] sm:$0xf]
    %v891 = vld [vmem:[%s9 + $0x44] sm:$0xf]
    %v892 = vld [vmem:[%s9 + $0x48] sm:$0xf]
    %v893 = vld [vmem:[%s9 + $0x4c] sm:$0xf]
    %v894 = vld [vmem:[%s9 + $0x50] sm:$0xf]
    %v895 = vld [vmem:[%s9 + $0x54] sm:$0xf]
    %v896 = vld [vmem:[%s9 + $0x58] sm:$0xf]
    %v897 = vld [vmem:[%s9 + $0x5c] sm:$0xf]
    %v898 = vld [vmem:[%s9 + $0x60] sm:$0xf]
    %v899 = vld [vmem:[%s9 + $0x64] sm:$0xf]
    %v900 = vld [vmem:[%s9 + $0x68] sm:$0xf]
    %v901 = vld [vmem:[%s9 + $0x6c] sm:$0xf]
    %v902 = vld [vmem:[%s9 + $0x70] sm:$0xf]
    %v903 = vld [vmem:[%s9 + $0x74] sm:$0xf]
    %v904 = vld [vmem:[%s9 + $0x78] sm:$0xf]
    %v905 = vld [vmem:[%s9 + $0x7c] sm:$0xf]
    %v906 = vld [vmem:[%s9 + $0x80] sm:$0xf]
    %v907 = vld [vmem:[%s9 + $0x84] sm:$0xf]
    %v908 = vld [vmem:[%s9 + $0x88] sm:$0xf]
    %v909 = vld [vmem:[%s9 + $0x8c] sm:$0xf]
    %v910 = vld [vmem:[%s9 + $0x90] sm:$0xf]
    %v911 = vld [vmem:[%s9 + $0x94] sm:$0xf]
    %v912 = vld [vmem:[%s9 + $0x98] sm:$0xf]
    %v913 = vld [vmem:[%s9 + $0x9c] sm:$0xf]
    %v914 = vld [vmem:[%s9 + $0xa0] sm:$0xf]
    %v915 = vld [vmem:[%s9 + $0xa4] sm:$0xf]
    %v916 = vld [vmem:[%s9 + $0xa8] sm:$0xf]
    %v917 = vld [vmem:[%s9 + $0xac] sm:$0xf]
    %v918 = vld [vmem:[%s9 + $0xb0] sm:$0xf]
    %v919 = vld [vmem:[%s9 + $0xb4] sm:$0xf]
    %v920 = vld [vmem:[%s9 + $0xb8] sm:$0xf]
    %v921 = vld [vmem:[%s9 + $0xbc] sm:$0xf]
    %v922 = vld [vmem:[%s9 + $0xc0] sm:$0xf]
    %v923 = vld [vmem:[%s9 + $0xc4] sm:$0xf]
    %v924 = vld [vmem:[%s9 + $0xc8] sm:$0xf]
    %v925 = vld [vmem:[%s9 + $0xcc] sm:$0xf]
    %v926 = vld [vmem:[%s9 + $0xd0] sm:$0xf]
    %v927 = vld [vmem:[%s9 + $0xd4] sm:$0xf]
    %v928 = vld [vmem:[%s9 + $0xd8] sm:$0xf]
    %v929 = vld [vmem:[%s9 + $0xdc] sm:$0xf]
    %v930 = vld [vmem:[%s9 + $0xe0] sm:$0xf]
    %v931 = vld [vmem:[%s9 + $0xe4] sm:$0xf]
    %v932 = vld [vmem:[%s9 + $0xe8] sm:$0xf]
    %v933 = vld [vmem:[%s9 + $0xec] sm:$0xf]
    %v934 = vld [vmem:[%s9 + $0xf0] sm:$0xf]
    %v935 = vld [vmem:[%s9 + $0xf4] sm:$0xf]
    %v936 = vld [vmem:[%s9 + $0xf8] sm:$0xf]
    %v937 = vld [vmem:[%s9 + $0xfc] sm:$0xf]
    %v938 = vld [vmem:[%s10] sm:$0x1]
    %v940 = vlaneseq
    %v941 = vshrl.u32 %v940, 7
    %v942 = vsub.s32 0, %v941
    %v943 = vrot.slane %v938, %v942
    %v1009 = vunpack.c.l.b16 %v874
    %v1010 = vunpack.c.l.b16 %v875
    %v1011 = vunpack.c.l.b16 %v876
    %v1012 = vunpack.c.l.b16 %v877
    %v1013 = vunpack.c.l.b16 %v878
    %v1014 = vunpack.c.l.b16 %v879
    %v1015 = vunpack.c.l.b16 %v880
    %v1016 = vunpack.c.l.b16 %v881
    %v1017 = vunpack.c.l.b16 %v882
    %v1018 = vunpack.c.l.b16 %v883
    %v1019 = vunpack.c.l.b16 %v884
    %v1020 = vunpack.c.l.b16 %v885
    %v1021 = vunpack.c.l.b16 %v886
    %v1022 = vunpack.c.l.b16 %v887
    %v1023 = vunpack.c.l.b16 %v888
    %v1024 = vunpack.c.l.b16 %v889
    %v1025 = vunpack.c.l.b16 %v890
    %v1026 = vunpack.c.l.b16 %v891
    %v1027 = vunpack.c.l.b16 %v892
    %v1028 = vunpack.c.l.b16 %v893
    %v1029 = vunpack.c.l.b16 %v894
    %v1030 = vunpack.c.l.b16 %v895
    %v1031 = vunpack.c.l.b16 %v896
    %v1032 = vunpack.c.l.b16 %v897
    %v1033 = vunpack.c.l.b16 %v898
    %v1034 = vunpack.c.l.b16 %v899
    %v1035 = vunpack.c.l.b16 %v900
    %v1036 = vunpack.c.l.b16 %v901
    %v1037 = vunpack.c.l.b16 %v902
    %v1038 = vunpack.c.l.b16 %v903
    %v1039 = vunpack.c.l.b16 %v904
    %v1040 = vunpack.c.l.b16 %v905
    %v1041 = vunpack.c.l.b16 %v906
    %v1042 = vunpack.c.l.b16 %v907
    %v1043 = vunpack.c.l.b16 %v908
    %v1044 = vunpack.c.l.b16 %v909
    %v1045 = vunpack.c.l.b16 %v910
    %v1046 = vunpack.c.l.b16 %v911
    %v1047 = vunpack.c.l.b16 %v912
    %v1048 = vunpack.c.l.b16 %v913
    %v1049 = vunpack.c.l.b16 %v914
    %v1050 = vunpack.c.l.b16 %v915
    %v1051 = vunpack.c.l.b16 %v916
    %v1052 = vunpack.c.l.b16 %v917
    %v1053 = vunpack.c.l.b16 %v918
    %v1054 = vunpack.c.l.b16 %v919
    %v1055 = vunpack.c.l.b16 %v920
    %v1056 = vunpack.c.l.b16 %v921
    %v1057 = vunpack.c.l.b16 %v922
    %v1058 = vunpack.c.l.b16 %v923
    %v1059 = vunpack.c.l.b16 %v924
    %v1060 = vunpack.c.l.b16 %v925
    %v1061 = vunpack.c.l.b16 %v926
    %v1062 = vunpack.c.l.b16 %v927
    %v1063 = vunpack.c.l.b16 %v928
    %v1064 = vunpack.c.l.b16 %v929
    %v1065 = vunpack.c.l.b16 %v930
    %v1066 = vunpack.c.l.b16 %v931
    %v1067 = vunpack.c.l.b16 %v932
    %v1068 = vunpack.c.l.b16 %v933
    %v1069 = vunpack.c.l.b16 %v934
    %v1070 = vunpack.c.l.b16 %v935
    %v1071 = vunpack.c.l.b16 %v936
    %v1072 = vunpack.c.l.b16 %v937
    %v1073 = vpack.c.b16 %v1010, %v1009
    %v1074 = vpack.c.b16 %v1012, %v1011
    %v1075 = vpack.c.b16 %v1014, %v1013
    %v1076 = vpack.c.b16 %v1016, %v1015
    %v1077 = vpack.c.b16 %v1018, %v1017
    %v1078 = vpack.c.b16 %v1020, %v1019
    %v1079 = vpack.c.b16 %v1022, %v1021
    %v1080 = vpack.c.b16 %v1024, %v1023
    %v1081 = vpack.c.b16 %v1026, %v1025
    %v1082 = vpack.c.b16 %v1028, %v1027
    %v1083 = vpack.c.b16 %v1030, %v1029
    %v1084 = vpack.c.b16 %v1032, %v1031
    %v1085 = vpack.c.b16 %v1034, %v1033
    %v1086 = vpack.c.b16 %v1036, %v1035
    %v1087 = vpack.c.b16 %v1038, %v1037
    %v1088 = vpack.c.b16 %v1040, %v1039
    %v1089 = vpack.c.b16 %v1042, %v1041
    %v1090 = vpack.c.b16 %v1044, %v1043
    %v1091 = vpack.c.b16 %v1046, %v1045
    %v1092 = vpack.c.b16 %v1048, %v1047
    %v1093 = vpack.c.b16 %v1050, %v1049
    %v1094 = vpack.c.b16 %v1052, %v1051
    %v1095 = vpack.c.b16 %v1054, %v1053
    %v1096 = vpack.c.b16 %v1056, %v1055
    %v1097 = vpack.c.b16 %v1058, %v1057
    %v1098 = vpack.c.b16 %v1060, %v1059
    %v1099 = vpack.c.b16 %v1062, %v1061
    %v1100 = vpack.c.b16 %v1064, %v1063
    %v1101 = vpack.c.b16 %v1066, %v1065
    %v1102 = vpack.c.b16 %v1068, %v1067
    %v1103 = vpack.c.b16 %v1070, %v1069
    %v1104 = vpack.c.b16 %v1072, %v1071
    %1137 = vmatprep.subr.bf16.mxu0 0
    %1138 = vmatpush1.bf16.msra.mxu0 %v1073
    %1139 = vmatprep.subr.bf16.mxu0 0
    %1140 = vmatpush1.bf16.msra.mxu0 %v1074
    %1141 = vmatprep.subr.bf16.mxu0 0
    %1142 = vmatpush1.bf16.msra.mxu0 %v1075
    %1143 = vmatprep.subr.bf16.mxu0 0
    %1144 = vmatpush1.bf16.msra.mxu0 %v1076
    %1145 = vmatprep.subr.bf16.mxu0 0
    %1146 = vmatpush1.bf16.msra.mxu0 %v1077
    %1147 = vmatprep.subr.bf16.mxu0 0
    %1148 = vmatpush1.bf16.msra.mxu0 %v1078
    %1149 = vmatprep.subr.bf16.mxu0 0
    %1150 = vmatpush1.bf16.msra.mxu0 %v1079
    %1151 = vmatprep.subr.bf16.mxu0 0
    %1152 = vmatpush1.bf16.msra.mxu0 %v1080
    %1153 = vmatprep.subr.bf16.mxu0 0
    %1154 = vmatpush1.bf16.msra.mxu0 %v1081
    %1155 = vmatprep.subr.bf16.mxu0 0
    %1156 = vmatpush1.bf16.msra.mxu0 %v1082
    %1157 = vmatprep.subr.bf16.mxu0 0
    %1158 = vmatpush1.bf16.msra.mxu0 %v1083
    %1159 = vmatprep.subr.bf16.mxu0 0
    %1160 = vmatpush1.bf16.msra.mxu0 %v1084
    %1161 = vmatprep.subr.bf16.mxu0 0
    %1162 = vmatpush1.bf16.msra.mxu0 %v1085
    %1163 = vmatprep.subr.bf16.mxu0 0
    %1164 = vmatpush1.bf16.msra.mxu0 %v1086
    %1165 = vmatprep.subr.bf16.mxu0 0
    %1166 = vmatpush1.bf16.msra.mxu0 %v1087
    %1167 = vmatprep.subr.bf16.mxu0 0
    %1168 = vmatpush1.bf16.msra.mxu0 %v1088
    %1169 = vmatprep.mubr.bf16.mxu0 %v871
    %1170 = vmatmul.mubr.bf16.gmra.mrb[0].mxu0 %v870
    %v1171 = vpop.f32.mrb[0].mxu0
    %v1172 = vadd.f32 %v943, %v1171
    %v1173 = vpop.f32.mrb[0].mxu0
    %v1174 = vpop.f32.mrb[0].mxu0
    %v1175 = vpop.f32.mrb[0].mxu0
    %1176 = vdwg.mxu0
    %1177 = vmatprep.subr.bf16.mxu0 0
    %1178 = vmatpush1.bf16.msra.mxu0 %v1089
    %1179 = vmatprep.subr.bf16.mxu0 0
    %1180 = vmatpush1.bf16.msra.mxu0 %v1090
    %1181 = vmatprep.subr.bf16.mxu0 0
    %1182 = vmatpush1.bf16.msra.mxu0 %v1091
    %1183 = vmatprep.subr.bf16.mxu0 0
    %1184 = vmatpush1.bf16.msra.mxu0 %v1092
    %1185 = vmatprep.subr.bf16.mxu0 0
    %1186 = vmatpush1.bf16.msra.mxu0 %v1093
    %1187 = vmatprep.subr.bf16.mxu0 0
    %1188 = vmatpush1.bf16.msra.mxu0 %v1094
    %1189 = vmatprep.subr.bf16.mxu0 0
    %1190 = vmatpush1.bf16.msra.mxu0 %v1095
    %1191 = vmatprep.subr.bf16.mxu0 0
    %1192 = vmatpush1.bf16.msra.mxu0 %v1096
    %1193 = vmatprep.subr.bf16.mxu0 0
    %1194 = vmatpush1.bf16.msra.mxu0 %v1097
    %1195 = vmatprep.subr.bf16.mxu0 0
    %1196 = vmatpush1.bf16.msra.mxu0 %v1098
    %1197 = vmatprep.subr.bf16.mxu0 0
    %1198 = vmatpush1.bf16.msra.mxu0 %v1099
    %1199 = vmatprep.subr.bf16.mxu0 0
    %1200 = vmatpush1.bf16.msra.mxu0 %v1100
    %1201 = vmatprep.subr.bf16.mxu0 0
    %1202 = vmatpush1.bf16.msra.mxu0 %v1101
    %1203 = vmatprep.subr.bf16.mxu0 0
    %1204 = vmatpush1.bf16.msra.mxu0 %v1102
    %1205 = vmatprep.subr.bf16.mxu0 0
    %1206 = vmatpush1.bf16.msra.mxu0 %v1103
    %1207 = vmatprep.subr.bf16.mxu0 0
    %1208 = vmatpush1.bf16.msra.mxu0 %v1104
    %1209 = vmatprep.mubr.bf16.mxu0 %v873
    %1210 = vmatmul.mubr.bf16.gmra.mrb[0].mxu0 %v872
    %v1211 = vpop.f32.mrb[0].mxu0
    %v1212 = vadd.f32 %v1172, %v1211
    %v1213 = vpop.f32.mrb[0].mxu0
    %v1214 = vpop.f32.mrb[0].mxu0
    %v1215 = vpop.f32.mrb[0].mxu0
    %1216 = vdwg.mxu0
    %vm1217 = vcmask 15360
    %1218 = vst.msk [vmem:[%s11] sm:$0xff] %vm1217, %v1212
    // Predicated region
    $region62: #{tpu_custom_call.1} parent=1 // pred_check
      _
    $region63: #{tpu_custom_call.1} parent=1 // pred_check_branch
      %1220 = sbr.rel (0) target = $region65
    $region64: #{tpu_custom_call.1} parent=1 // pred_region
      _
    $region65: #{tpu_custom_call.1} parent=1 // pred_fallthru
      _
    // Predicated region
    $region66: #{tpu_custom_call.1} parent=1 // pred_check
      _
    $region67: #{tpu_custom_call.1} parent=1 // pred_check_branch
      %1222 = sbr.rel (0) target = $region69
    $region68: #{tpu_custom_call.1} parent=1 // pred_region
      _
    $region69: #{tpu_custom_call.1} parent=1 // pred_fallthru
      _
    %1223 = vsyncpa [#allocation3], 1
    %1224 = vsyncpa [#allocation5], 1
    %1225 = vsyncpa [#allocation8], 1

</llo_original>
